<compile_context>
chip_gen: v7x
topology: tpu7x:2x2x1
jax: 0.10.0
libtpu: 0.0.40
codegen_flags: <defaults>
</compile_context>

<pallas_src>
from functools import partial

import jax
import jax.numpy as jnp
from jax.experimental import pallas as pl
from jax.experimental.pallas import tpu as pltpu


NEG_MASK = -1e30      # baked into padded b_out lanes -> excluded from softmax
_HEAD_TILE_V = 2048   # vocab tile (lane) width for the output head


def _round_up(n, m):
    return (n + m - 1) // m * m


def _gru_decoder_kernel(
    hp,                               # padded hidden size (static, closed over)
    # inputs
    x_ref,                            # (1, 1, Ip)  f32  — current step's input
    h0_ref,                           # (1, Hp)     f32  — initial hidden (constant)
    w_ih_ref, w_hh_ref,               # bf16 (Ip, 3Hp) / (Hp, 3Hp), constant blocks
    b_g_ref, b_hn_ref,                # f32  (1, 3Hp)  / (1, Hp),   constant blocks
    w_out_ref, b_out_ref,             # bf16 (Hp, TILE_V), f32 (1, TILE_V)
    # outputs
    logits_ref,                       # (1, 1, TILE_V) f32 — raw logits for this tile
    lse_ref,                          # (1, 1, 128)    f32 — per-step log-sum-exp
    h_out_ref,                        # (1, Hp)        f32 — final hidden state
    # scratch
    h_vmem,                           # (1, Hp)  f32 — hidden carried across steps
    m_vmem, s_vmem,                   # (1, 128) f32 — online max / sum-exp
):
    t = pl.program_id(0)
    v = pl.program_id(1)
    nv = pl.num_programs(1)

    # ---- GRU cell: runs once per time step (first vocab tile) --------------
    @pl.when(v == 0)
    def _gru_step():
        @pl.when(t == 0)
        def _():
            h_vmem[...] = h0_ref[...]

        x = x_ref[0]                    # (1, Ip)
        h = h_vmem[...]                 # (1, Hp); padded lanes are 0

        # Two fused MXU pushes instead of six per-gate matvecs.
        gi = (jnp.dot(x.astype(jnp.bfloat16), w_ih_ref[...],
                      preferred_element_type=jnp.float32) + b_g_ref[...])
        gh = jnp.dot(h.astype(jnp.bfloat16), w_hh_ref[...],
                     preferred_element_type=jnp.float32)

        gi_r, gi_z, gi_n = gi[:, 0:hp], gi[:, hp:2 * hp], gi[:, 2 * hp:3 * hp]
        gh_r, gh_z, gh_n = gh[:, 0:hp], gh[:, hp:2 * hp], gh[:, 2 * hp:3 * hp]

        # PyTorch GRU semantics (element-wise math in f32):
        r = jax.nn.sigmoid(gi_r + gh_r)
        z = jax.nn.sigmoid(gi_z + gh_z)
        n = jnp.tanh(gi_n + r * (gh_n + b_hn_ref[...]))
        h_new = (1.0 - z) * n + z * h           # padded lanes stay 0

        h_vmem[...] = h_new
        h_out_ref[...] = h_new                  # last step's write survives
        m_vmem[...] = jnp.full((1, 128), -jnp.inf, jnp.float32)
        s_vmem[...] = jnp.zeros((1, 128), jnp.float32)

    # ---- output head: one vocab tile per grid step --------------------------
    h_new = h_vmem[...]
    logits = (jnp.dot(h_new.astype(jnp.bfloat16), w_out_ref[...],
                      preferred_element_type=jnp.float32) + b_out_ref[...])
    logits_ref[...] = logits[None]              # (1, 1, TILE_V)

    # online log-sum-exp across vocab tiles
    m_prev = m_vmem[...]                                     # (1, 128), equal lanes
    m_tile = jnp.max(logits, axis=-1, keepdims=True)         # (1, 1)
    m_new = jnp.maximum(m_prev, m_tile)                      # (1, 128)
    p_sum = jnp.sum(jnp.exp(logits - m_new[:, 0:1]), axis=-1, keepdims=True)
    s_vmem[...] = s_vmem[...] * jnp.exp(m_prev - m_new) + p_sum
    m_vmem[...] = m_new

    @pl.when(v == nv - 1)
    def _finalize():
        lse = m_vmem[...] + jnp.log(s_vmem[...])             # (1, 128), equal lanes
        lse_ref[...] = lse[None]


def _head_tile(op_total):
    return min(op_total, _HEAD_TILE_V)


def _fused_decode_call(x3d, h2d, packed):
    """One pallas_call running T GRU+head steps; returns (logits, lse, h_final)."""
    t_steps, _, ip = x3d.shape
    hp = h2d.shape[1]
    op_total = packed["b_out"].shape[1]
    tile_v = _head_tile(op_total)
    nv = op_total // tile_v

    # rough VMEM budget: resident GRU weights + double-buffered head tiles
    gru_bytes = (ip + hp) * 3 * hp * 2 + (3 * hp + hp) * 4
    head_tile_bytes = hp * tile_v * 2 + tile_v * 4
    act_bytes = (ip + hp + tile_v + 128 + hp + 2 * 128) * 4
    est = gru_bytes + 2 * 2 * head_tile_bytes + 4 * act_bytes
    vmem_limit = None
    if est > (32 << 20):
        vmem_limit = int(min(est + (4 << 20), 60 << 20))   # leave v7x headroom

    cost = pl.CostEstimate(
        flops=int(2 * t_steps * (ip * 3 * hp + hp * 3 * hp + hp * op_total)),
        transcendentals=int(t_steps * (op_total + 3 * hp)),
        bytes_accessed=int(gru_bytes
                           + t_steps * (hp * op_total * 2
                                        + (ip + op_total + 128) * 4)
                           + hp * 4 * 2),
    )

    grid_spec = pltpu.PrefetchScalarGridSpec(
        num_scalar_prefetch=0,
        grid=(t_steps, nv),
        in_specs=[
            pl.BlockSpec((1, 1, ip), lambda t, v: (t, 0, 0)),      # x (per step)
            pl.BlockSpec((1, hp), lambda t, v: (0, 0)),            # h0 (resident)
            pl.BlockSpec((ip, 3 * hp), lambda t, v: (0, 0)),       # w_ih (resident)
            pl.BlockSpec((hp, 3 * hp), lambda t, v: (0, 0)),       # w_hh (resident)
            pl.BlockSpec((1, 3 * hp), lambda t, v: (0, 0)),        # b_g  (resident)
            pl.BlockSpec((1, hp), lambda t, v: (0, 0)),            # b_hn (resident)
            pl.BlockSpec((hp, tile_v), lambda t, v: (0, v)),       # w_out vocab tile
            pl.BlockSpec((1, tile_v), lambda t, v: (0, v)),        # b_out vocab tile
        ],
        out_specs=(
            pl.BlockSpec((1, 1, tile_v), lambda t, v: (t, 0, v)),  # logits
            pl.BlockSpec((1, 1, 128), lambda t, v: (t, 0, 0)),     # lse per step
            pl.BlockSpec((1, hp), lambda t, v: (0, 0)),            # final hidden
        ),
        scratch_shapes=[
            pltpu.VMEM((1, hp), jnp.float32),    # carried hidden state
            pltpu.VMEM((1, 128), jnp.float32),   # running max
            pltpu.VMEM((1, 128), jnp.float32),   # running sum-exp
        ],
    )

    return pl.pallas_call(
        partial(_gru_decoder_kernel, hp),
        out_shape=(
            jax.ShapeDtypeStruct((t_steps, 1, op_total), jnp.float32),
            jax.ShapeDtypeStruct((t_steps, 1, 128), jnp.float32),
            jax.ShapeDtypeStruct((1, hp), jnp.float32),
        ),
        grid_spec=grid_spec,
        input_output_aliases={1: 2},   # h0 buffer reused for the final hidden
        compiler_params=pltpu.CompilerParams(
            dimension_semantics=("arbitrary", "arbitrary"),
            vmem_limit_bytes=vmem_limit,
        ),
        cost_estimate=cost,
    )(x3d, h2d, packed["w_ih"], packed["w_hh"], packed["b_g"],
      packed["b_hn"], packed["w_out"], packed["b_out"])


def pack_params(params, input_size, hidden_size, output_size):
    """Concatenate / pad / cast the per-gate parameters for the kernel."""
    ip = _round_up(input_size, 16)          # bf16 sublane pack on contraction dim
    hp = _round_up(hidden_size, 128)
    op_p = _round_up(output_size, 128)
    tile_v = min(op_p, _HEAD_TILE_V)
    op_total = _round_up(op_p, tile_v)
    I, H, O = input_size, hidden_size, output_size

    w_ih = jnp.zeros((ip, 3 * hp), jnp.float32)
    w_ih = w_ih.at[:I, 0:H].set(params["w_ir"])
    w_ih = w_ih.at[:I, hp:hp + H].set(params["w_iz"])
    w_ih = w_ih.at[:I, 2 * hp:2 * hp + H].set(params["w_in"])

    w_hh = jnp.zeros((hp, 3 * hp), jnp.float32)
    w_hh = w_hh.at[:H, 0:H].set(params["w_hr"])
    w_hh = w_hh.at[:H, hp:hp + H].set(params["w_hz"])
    w_hh = w_hh.at[:H, 2 * hp:2 * hp + H].set(params["w_hn"])

    b_g = jnp.zeros((1, 3 * hp), jnp.float32)
    b_g = b_g.at[:, 0:H].set(params["b_ir"] + params["b_hr"])
    b_g = b_g.at[:, hp:hp + H].set(params["b_iz"] + params["b_hz"])
    b_g = b_g.at[:, 2 * hp:2 * hp + H].set(params["b_in"])

    b_hn = jnp.zeros((1, hp), jnp.float32).at[:, :H].set(params["b_hn"])

    w_out = jnp.zeros((hp, op_total), jnp.float32).at[:H, :O].set(params["w_out"])
    b_out = jnp.full((1, op_total), NEG_MASK, jnp.float32).at[:, :O].set(
        params["b_out"])

    return {
        "w_ih": w_ih.astype(jnp.bfloat16),
        "w_hh": w_hh.astype(jnp.bfloat16),
        "b_g": b_g,
        "b_hn": b_hn,
        "w_out": w_out.astype(jnp.bfloat16),
        "b_out": b_out,
    }


@partial(jax.jit, static_argnames=("input_size", "hidden_size", "output_size"))
def general_decoder_rnn_forward(x, hidden, packed, *, input_size, hidden_size,
                                output_size):
    """Single-step forward matching GeneralDecoderRNN.forward.

    Returns (log_probs, new_hidden) with shapes (1, output_size) and
    (1, 1, hidden_size).
    """
    ip = packed["w_ih"].shape[0]
    hp = packed["w_hh"].shape[0]

    x3d = jnp.zeros((1, 1, ip), jnp.float32).at[0, 0, :input_size].set(
        jnp.asarray(x, jnp.float32).reshape(-1))
    h2d = jnp.zeros((1, hp), jnp.float32).at[0, :hidden_size].set(
        jnp.asarray(hidden, jnp.float32).reshape(-1))

    logits, lse, h_p = _fused_decode_call(x3d, h2d, packed)
    log_probs = logits[:, 0, :output_size] - lse[:, 0, 0:1]
    new_hidden = h_p[:, :hidden_size].reshape(1, 1, hidden_size)
    return log_probs, new_hidden


@partial(jax.jit, static_argnames=("input_size", "hidden_size", "output_size"))
def decode_sequence(x_seq, hidden, packed, *, input_size, hidden_size,
                    output_size):
    """Fused T-step decode: one pallas_call for the whole loop.

    x_seq: (T, input_size).  Returns ((T, output_size) log-probs, final hidden
    of shape (1, 1, hidden_size)).
    """
    ip = packed["w_ih"].shape[0]
    hp = packed["w_hh"].shape[0]
    t_steps = x_seq.shape[0]

    x3d = jnp.zeros((t_steps, 1, ip), jnp.float32).at[:, 0, :input_size].set(
        jnp.asarray(x_seq, jnp.float32).reshape(t_steps, -1))
    h2d = jnp.zeros((1, hp), jnp.float32).at[0, :hidden_size].set(
        jnp.asarray(hidden, jnp.float32).reshape(-1))

    logits, lse, h_p = _fused_decode_call(x3d, h2d, packed)
    log_probs = logits[:, 0, :output_size] - lse[:, 0, 0:1]
    new_hidden = h_p[:, :hidden_size].reshape(1, 1, hidden_size)
    return log_probs, new_hidden


def init_params(key, input_size, hidden_size, output_size):
    """Deterministic per-gate parameter init matching the module's shapes."""
    bound = 1.0 / jnp.sqrt(hidden_size)
    keys = jax.random.split(key, 14)

    def u(k, shape):
        return jax.random.uniform(k, shape, jnp.float32, -bound, bound)

    return {
        "w_ir": u(keys[0], (input_size, hidden_size)),
        "w_iz": u(keys[1], (input_size, hidden_size)),
        "w_in": u(keys[2], (input_size, hidden_size)),
        "w_hr": u(keys[3], (hidden_size, hidden_size)),
        "w_hz": u(keys[4], (hidden_size, hidden_size)),
        "w_hn": u(keys[5], (hidden_size, hidden_size)),
        "b_ir": u(keys[6], (1, hidden_size)),
        "b_iz": u(keys[7], (1, hidden_size)),
        "b_in": u(keys[8], (1, hidden_size)),
        "b_hr": u(keys[9], (1, hidden_size)),
        "b_hz": u(keys[10], (1, hidden_size)),
        "b_hn": u(keys[11], (1, hidden_size)),
        "w_out": u(keys[12], (hidden_size, output_size)),
        "b_out": u(keys[13], (1, output_size)),
    }


def _reference_decode(x_seq, hidden, packed, input_size, hidden_size,
                      output_size):
    """Pure-JAX reference mirroring the kernel math (same bf16 quantization)."""
    ip = packed["w_ih"].shape[0]
    hp = packed["w_hh"].shape[0]

    def q(a):   # bf16 round-trip, mirrors activation casts at the MXU inputs
        return a.astype(jnp.bfloat16).astype(jnp.float32)

    w_ih = packed["w_ih"].astype(jnp.float32)
    w_hh = packed["w_hh"].astype(jnp.float32)
    w_out = packed["w_out"].astype(jnp.float32)

    h = jnp.zeros((1, hp), jnp.float32).at[0, :hidden_size].set(
        jnp.asarray(hidden, jnp.float32).reshape(-1))
    logps = []
    for t in range(x_seq.shape[0]):
        x = jnp.zeros((1, ip), jnp.float32).at[0, :input_size].set(x_seq[t])
        gi = q(x) @ w_ih + packed["b_g"]
        gh = q(h) @ w_hh
        gi_r, gi_z, gi_n = gi[:, :hp], gi[:, hp:2 * hp], gi[:, 2 * hp:]
        gh_r, gh_z, gh_n = gh[:, :hp], gh[:, hp:2 * hp], gh[:, 2 * hp:]
        r = jax.nn.sigmoid(gi_r + gh_r)
        z = jax.nn.sigmoid(gi_z + gh_z)
        n = jnp.tanh(gi_n + r * (gh_n + packed["b_hn"]))
        h = (1.0 - z) * n + z * h
        logits = q(h) @ w_out + packed["b_out"]
        logps.append(jax.nn.log_softmax(logits, axis=-1)[0, :output_size])
    return jnp.stack(logps), h[:, :hidden_size].reshape(1, 1, hidden_size)


if __name__ == "__main__":
    input_size, hidden_size, output_size = 16, 32, 10
    T = 6

    key = jax.random.PRNGKey(0)
    k_param, k_x = jax.random.split(key)

    raw_params = init_params(k_param, input_size, hidden_size, output_size)
    packed = pack_params(raw_params, input_size, hidden_size, output_size)

    x_seq = jax.random.normal(k_x, (T, input_size), jnp.float32)
    hidden0 = jnp.zeros((1, 1, hidden_size), jnp.float32)   # initHidden()

    # --- single-step module-parity call -------------------------------------
    log_probs, new_hidden = general_decoder_rnn_forward(
        x_seq[0], hidden0, packed,
        input_size=input_size, hidden_size=hidden_size, output_size=output_size)
    jax.block_until_ready((log_probs, new_hidden))

    ref_lp1, ref_h1 = _reference_decode(
        x_seq[:1], hidden0, packed, input_size, hidden_size, output_size)
    assert log_probs.shape == (1, output_size)
    assert new_hidden.shape == (1, 1, hidden_size)
    assert jnp.allclose(log_probs[0], ref_lp1[0], atol=1e-3), (
        float(jnp.max(jnp.abs(log_probs[0] - ref_lp1[0]))))
    assert jnp.allclose(new_hidden, ref_h1, atol=1e-3), (
        float(jnp.max(jnp.abs(new_hidden - ref_h1))))

    # --- fused T-step decode (one pallas_call for the whole loop) -----------
    logps, h_final = decode_sequence(
        x_seq, hidden0, packed,
        input_size=input_size, hidden_size=hidden_size, output_size=output_size)
    jax.block_until_ready((logps, h_final))

    ref_lps, ref_hT = _reference_decode(
        x_seq, hidden0, packed, input_size, hidden_size, output_size)
    assert logps.shape == (T, output_size)
    assert h_final.shape == (1, 1, hidden_size)
    assert bool(jnp.all(jnp.isfinite(logps)))
    assert jnp.allclose(logps, ref_lps, atol=1e-3), (
        float(jnp.max(jnp.abs(logps - ref_lps))))
    assert jnp.allclose(h_final, ref_hT, atol=1e-3), (
        float(jnp.max(jnp.abs(h_final - ref_hT))))

    # --- short chained single-step loop (module-style usage) ----------------
    h = hidden0
    for t in range(3):
        lp, h = general_decoder_rnn_forward(
            x_seq[t], h, packed,
            input_size=input_size, hidden_size=hidden_size,
            output_size=output_size)
    jax.block_until_ready((lp, h))
    ref_lp3, ref_h3 = _reference_decode(
        x_seq[:3], hidden0, packed, input_size, hidden_size, output_size)
    assert jnp.allclose(lp[0], ref_lp3[-1], atol=1e-3)
    assert jnp.allclose(h, ref_h3, atol=1e-3)

    print("KERNEL_OK")
</pallas_src>

<mosaic_0001>
module attributes {stable_mosaic.version = 11 : i64} {
  func.func @_gru_decoder_kernel(%arg0: i32, %arg1: i32, %arg2: memref<1x1x16xf32, #tpu.memory_space<vmem>>, %arg3: memref<1x128xf32, #tpu.memory_space<vmem>>, %arg4: memref<16x384xbf16, #tpu.memory_space<vmem>>, %arg5: memref<128x384xbf16, #tpu.memory_space<vmem>>, %arg6: memref<1x384xf32, #tpu.memory_space<vmem>>, %arg7: memref<1x128xf32, #tpu.memory_space<vmem>>, %arg8: memref<128x128xbf16, #tpu.memory_space<vmem>>, %arg9: memref<1x128xf32, #tpu.memory_space<vmem>>, %arg10: memref<1x1x128xf32, #tpu.memory_space<vmem>>, %arg11: memref<1x1x128xf32, #tpu.memory_space<vmem>>, %arg12: memref<1x128xf32, #tpu.memory_space<vmem>>, %arg13: memref<1x128xf32, #tpu.memory_space<vmem>>, %arg14: memref<1x128xf32, #tpu.memory_space<vmem>>, %arg15: memref<1x128xf32, #tpu.memory_space<vmem>>) attributes {dimension_semantics = [#tpu.dimension_semantics<arbitrary>, #tpu.dimension_semantics<arbitrary>], iteration_bounds = array<i64: 1, 1>, scalar_prefetch = 0 : i64, scratch_operands = 3 : i64, tpu.core_type = #tpu.core_type<tc>, window_params = [{transform_indices = @transform_0, window_bounds = array<i64: 1, 1, 16>}, {pipeline_mode = #tpu.pipeline_mode<synchronous>, transform_indices = @transform_1, window_bounds = array<i64: 1, 128>}, {pipeline_mode = #tpu.pipeline_mode<synchronous>, transform_indices = @transform_2, window_bounds = array<i64: 16, 384>}, {pipeline_mode = #tpu.pipeline_mode<synchronous>, transform_indices = @transform_3, window_bounds = array<i64: 128, 384>}, {pipeline_mode = #tpu.pipeline_mode<synchronous>, transform_indices = @transform_4, window_bounds = array<i64: 1, 384>}, {pipeline_mode = #tpu.pipeline_mode<synchronous>, transform_indices = @transform_5, window_bounds = array<i64: 1, 128>}, {transform_indices = @transform_6, window_bounds = array<i64: 128, 128>}, {transform_indices = @transform_7, window_bounds = array<i64: 1, 128>}, {transform_indices = @transform_8, window_bounds = array<i64: 1, 1, 128>}, {transform_indices = @transform_9, window_bounds = array<i64: 1, 1, 128>}, {pipeline_mode = #tpu.pipeline_mode<synchronous>, transform_indices = @transform_10, window_bounds = array<i64: 1, 128>}]} {
    %c0_i32 = arith.constant 0 : i32
    %0 = arith.cmpi eq, %arg1, %c0_i32 : i32
    %1 = arith.extui %0 : i1 to i32
    %c0_i32_0 = arith.constant 0 : i32
    %2 = arith.cmpi ne, %1, %c0_i32_0 : i32
    scf.if %2 {
      %c0_i32_21 = arith.constant 0 : i32
      %33 = arith.cmpi eq, %arg0, %c0_i32_21 : i32
      %34 = arith.extui %33 : i1 to i32
      %c0_i32_22 = arith.constant 0 : i32
      %35 = arith.cmpi ne, %34, %c0_i32_22 : i32
      scf.if %35 {
        %c0_51 = arith.constant 0 : index
        %c0_52 = arith.constant 0 : index
        %81 = vector.load %arg3[%c0_51, %c0_52] : memref<1x128xf32, #tpu.memory_space<vmem>>, vector<1x128xf32>
        %c0_53 = arith.constant 0 : index
        %c0_54 = arith.constant 0 : index
        %82 = vector.load %arg13[%c0_53, %c0_54] : memref<1x128xf32, #tpu.memory_space<vmem>>, vector<1x128xf32>
        tpu.vector_store %arg13[%c0_53, %c0_54], %81 {strides = array<i32>} : memref<1x128xf32, #tpu.memory_space<vmem>>, vector<1x128xf32>,
      } else {
      }
      %c0_23 = arith.constant 0 : index
      %c0_24 = arith.constant 0 : index
      %c0_25 = arith.constant 0 : index
      %36 = vector.load %arg2[%c0_23, %c0_24, %c0_25] : memref<1x1x16xf32, #tpu.memory_space<vmem>>, vector<1x1x16xf32>
      %37 = vector.shape_cast %36 : vector<1x1x16xf32> to vector<1x16xf32>
      %c0_26 = arith.constant 0 : index
      %c0_27 = arith.constant 0 : index
      %38 = vector.load %arg13[%c0_26, %c0_27] : memref<1x128xf32, #tpu.memory_space<vmem>>, vector<1x128xf32>
      %39 = arith.truncf %37 : vector<1x16xf32> to vector<1x16xbf16>
      %c0_28 = arith.constant 0 : index
      %c0_29 = arith.constant 0 : index
      %40 = vector.load %arg4[%c0_28, %c0_29] : memref<16x384xbf16, #tpu.memory_space<vmem>>, vector<16x384xbf16>
      %cst_30 = arith.constant dense<0.000000e+00> : vector<1x384xf32>
      %41 = tpu.matmul %39, %40, %cst_30 {dimension_numbers = #tpu.dot_dimension_numbers<[1], [0], [0], [1], [0, 0, 1, 1], [], []>} : vector<1x16xbf16>, vector<16x384xbf16>, vector<1x384xf32> -> vector<1x384xf32>
      %c0_31 = arith.constant 0 : index
      %c0_32 = arith.constant 0 : index
      %42 = vector.load %arg6[%c0_31, %c0_32] : memref<1x384xf32, #tpu.memory_space<vmem>>, vector<1x384xf32>
      %43 = arith.addf %41, %42 : vector<1x384xf32>
      %44 = arith.truncf %38 : vector<1x128xf32> to vector<1x128xbf16>
      %c0_33 = arith.constant 0 : index
      %c0_34 = arith.constant 0 : index
      %45 = vector.load %arg5[%c0_33, %c0_34] : memref<128x384xbf16, #tpu.memory_space<vmem>>, vector<128x384xbf16>
      %cst_35 = arith.constant dense<0.000000e+00> : vector<1x384xf32>
      %46 = tpu.matmul %44, %45, %cst_35 {dimension_numbers = #tpu.dot_dimension_numbers<[1], [0], [0], [1], [0, 0, 1, 1], [], []>} : vector<1x128xbf16>, vector<128x384xbf16>, vector<1x384xf32> -> vector<1x384xf32>
      %47 = vector.extract_strided_slice %43 {offsets = [0, 0], sizes = [1, 128], strides = [1, 1]} : vector<1x384xf32> to vector<1x128xf32>
      %48 = vector.extract_strided_slice %43 {offsets = [0, 128], sizes = [1, 128], strides = [1, 1]} : vector<1x384xf32> to vector<1x128xf32>
      %49 = vector.extract_strided_slice %43 {offsets = [0, 256], sizes = [1, 128], strides = [1, 1]} : vector<1x384xf32> to vector<1x128xf32>
      %50 = vector.extract_strided_slice %46 {offsets = [0, 0], sizes = [1, 128], strides = [1, 1]} : vector<1x384xf32> to vector<1x128xf32>
      %51 = vector.extract_strided_slice %46 {offsets = [0, 128], sizes = [1, 128], strides = [1, 1]} : vector<1x384xf32> to vector<1x128xf32>
      %52 = vector.extract_strided_slice %46 {offsets = [0, 256], sizes = [1, 128], strides = [1, 1]} : vector<1x384xf32> to vector<1x128xf32>
      %53 = arith.addf %47, %50 : vector<1x128xf32>
      %54 = arith.negf %53 : vector<1x128xf32>
      %55 = math.exp %54 : vector<1x128xf32>
      %cst_36 = arith.constant 1.000000e+00 : f32
      %56 = vector.broadcast %cst_36 : f32 to vector<1x128xf32>
      %57 = arith.addf %56, %55 : vector<1x128xf32>
      %58 = arith.divf %56, %57 : vector<1x128xf32>
      %59 = arith.addf %48, %51 : vector<1x128xf32>
      %60 = arith.negf %59 : vector<1x128xf32>
      %61 = math.exp %60 : vector<1x128xf32>
      %cst_37 = arith.constant 1.000000e+00 : f32
      %62 = vector.broadcast %cst_37 : f32 to vector<1x128xf32>
      %63 = arith.addf %62, %61 : vector<1x128xf32>
      %64 = arith.divf %62, %63 : vector<1x128xf32>
      %c0_38 = arith.constant 0 : index
      %c0_39 = arith.constant 0 : index
      %65 = vector.load %arg7[%c0_38, %c0_39] : memref<1x128xf32, #tpu.memory_space<vmem>>, vector<1x128xf32>
      %66 = arith.addf %52, %65 : vector<1x128xf32>
      %67 = arith.mulf %58, %66 : vector<1x128xf32>
      %68 = arith.addf %49, %67 : vector<1x128xf32>
      %69 = math.tanh %68 : vector<1x128xf32>
      %cst_40 = arith.constant 1.000000e+00 : f32
      %70 = vector.broadcast %cst_40 : f32 to vector<1x128xf32>
      %71 = arith.subf %70, %64 : vector<1x128xf32>
      %72 = arith.mulf %71, %69 : vector<1x128xf32>
      %73 = arith.mulf %64, %38 : vector<1x128xf32>
      %74 = arith.addf %72, %73 : vector<1x128xf32>
      %c0_41 = arith.constant 0 : index
      %c0_42 = arith.constant 0 : index
      %75 = vector.load %arg13[%c0_41, %c0_42] : memref<1x128xf32, #tpu.memory_space<vmem>>, vector<1x128xf32>
      tpu.vector_store %arg13[%c0_41, %c0_42], %74 {strides = array<i32>} : memref<1x128xf32, #tpu.memory_space<vmem>>, vector<1x128xf32>,
      %c0_43 = arith.constant 0 : index
      %c0_44 = arith.constant 0 : index
      %76 = vector.load %arg12[%c0_43, %c0_44] : memref<1x128xf32, #tpu.memory_space<vmem>>, vector<1x128xf32>
      tpu.vector_store %arg12[%c0_43, %c0_44], %74 {strides = array<i32>} : memref<1x128xf32, #tpu.memory_space<vmem>>, vector<1x128xf32>,
      %cst_45 = arith.constant 0xFF800000 : f32
      %77 = vector.broadcast %cst_45 : f32 to vector<1x128xf32>
      %c0_46 = arith.constant 0 : index
      %c0_47 = arith.constant 0 : index
      %78 = vector.load %arg14[%c0_46, %c0_47] : memref<1x128xf32, #tpu.memory_space<vmem>>, vector<1x128xf32>
      tpu.vector_store %arg14[%c0_46, %c0_47], %77 {strides = array<i32>} : memref<1x128xf32, #tpu.memory_space<vmem>>, vector<1x128xf32>,
      %cst_48 = arith.constant 0.000000e+00 : f32
      %79 = vector.broadcast %cst_48 : f32 to vector<1x128xf32>
      %c0_49 = arith.constant 0 : index
      %c0_50 = arith.constant 0 : index
      %80 = vector.load %arg15[%c0_49, %c0_50] : memref<1x128xf32, #tpu.memory_space<vmem>>, vector<1x128xf32>
      tpu.vector_store %arg15[%c0_49, %c0_50], %79 {strides = array<i32>} : memref<1x128xf32, #tpu.memory_space<vmem>>, vector<1x128xf32>,
    } else {
    }
    %c0 = arith.constant 0 : index
    %c0_1 = arith.constant 0 : index
    %3 = vector.load %arg13[%c0, %c0_1] : memref<1x128xf32, #tpu.memory_space<vmem>>, vector<1x128xf32>
    %4 = arith.truncf %3 : vector<1x128xf32> to vector<1x128xbf16>
    %c0_2 = arith.constant 0 : index
    %c0_3 = arith.constant 0 : index
    %5 = vector.load %arg8[%c0_2, %c0_3] : memref<128x128xbf16, #tpu.memory_space<vmem>>, vector<128x128xbf16>
    %cst = arith.constant dense<0.000000e+00> : vector<1x128xf32>
    %6 = tpu.matmul %4, %5, %cst {dimension_numbers = #tpu.dot_dimension_numbers<[1], [0], [0], [1], [0, 0, 1, 1], [], []>} : vector<1x128xbf16>, vector<128x128xbf16>, vector<1x128xf32> -> vector<1x128xf32>
    %c0_4 = arith.constant 0 : index
    %c0_5 = arith.constant 0 : index
    %7 = vector.load %arg9[%c0_4, %c0_5] : memref<1x128xf32, #tpu.memory_space<vmem>>, vector<1x128xf32>
    %8 = arith.addf %6, %7 : vector<1x128xf32>
    %9 = vector.shape_cast %8 : vector<1x128xf32> to vector<1x1x128xf32>
    %c0_6 = arith.constant 0 : index
    %c0_7 = arith.constant 0 : index
    %c0_8 = arith.constant 0 : index
    %10 = vector.load %arg10[%c0_6, %c0_7, %c0_8] : memref<1x1x128xf32, #tpu.memory_space<vmem>>, vector<1x1x128xf32>
    tpu.vector_store %arg10[%c0_6, %c0_7, %c0_8], %9 {strides = array<i32>} : memref<1x1x128xf32, #tpu.memory_space<vmem>>, vector<1x1x128xf32>,
    %c0_9 = arith.constant 0 : index
    %c0_10 = arith.constant 0 : index
    %11 = vector.load %arg14[%c0_9, %c0_10] : memref<1x128xf32, #tpu.memory_space<vmem>>, vector<1x128xf32>
    %cst_11 = arith.constant dense<0xFF800000> : vector<1xf32>
    %12 = vector.multi_reduction <maximumf>, %8, %cst_11 [1] : vector<1x128xf32> to vector<1xf32>
    %13 = vector.shape_cast %12 : vector<1xf32> to vector<1x1xf32>
    %14 = vector.broadcast %13 : vector<1x1xf32> to vector<1x128xf32>
    %15 = arith.maximumf %11, %14 : vector<1x128xf32>
    %16 = vector.extract_strided_slice %15 {offsets = [0, 0], sizes = [1, 1], strides = [1, 1]} : vector<1x128xf32> to vector<1x1xf32>
    %17 = vector.broadcast %16 : vector<1x1xf32> to vector<1x128xf32>
    %18 = arith.subf %8, %17 : vector<1x128xf32>
    %19 = math.exp %18 : vector<1x128xf32>
    %cst_12 = arith.constant dense<0.000000e+00> : vector<1xf32>
    %20 = vector.multi_reduction <add>, %19, %cst_12 [1] : vector<1x128xf32> to vector<1xf32>
    %21 = vector.shape_cast %20 : vector<1xf32> to vector<1x1xf32>
    %c0_13 = arith.constant 0 : index
    %c0_14 = arith.constant 0 : index
    %22 = vector.load %arg15[%c0_13, %c0_14] : memref<1x128xf32, #tpu.memory_space<vmem>>, vector<1x128xf32>
    %23 = arith.subf %11, %15 : vector<1x128xf32>
    %24 = math.exp %23 : vector<1x128xf32>
    %25 = arith.mulf %22, %24 : vector<1x128xf32>
    %26 = vector.broadcast %21 : vector<1x1xf32> to vector<1x128xf32>
    %27 = arith.addf %25, %26 : vector<1x128xf32>
    %c0_15 = arith.constant 0 : index
    %c0_16 = arith.constant 0 : index
    %28 = vector.load %arg15[%c0_15, %c0_16] : memref<1x128xf32, #tpu.memory_space<vmem>>, vector<1x128xf32>
    tpu.vector_store %arg15[%c0_15, %c0_16], %27 {strides = array<i32>} : memref<1x128xf32, #tpu.memory_space<vmem>>, vector<1x128xf32>,
    %c0_17 = arith.constant 0 : index
    %c0_18 = arith.constant 0 : index
    %29 = vector.load %arg14[%c0_17, %c0_18] : memref<1x128xf32, #tpu.memory_space<vmem>>, vector<1x128xf32>
    tpu.vector_store %arg14[%c0_17, %c0_18], %15 {strides = array<i32>} : memref<1x128xf32, #tpu.memory_space<vmem>>, vector<1x128xf32>,
    %c0_i32_19 = arith.constant 0 : i32
    %30 = arith.cmpi eq, %arg1, %c0_i32_19 : i32
    %31 = arith.extui %30 : i1 to i32
    %c0_i32_20 = arith.constant 0 : i32
    %32 = arith.cmpi ne, %31, %c0_i32_20 : i32
    scf.if %32 {
      %c0_21 = arith.constant 0 : index
      %c0_22 = arith.constant 0 : index
      %33 = vector.load %arg14[%c0_21, %c0_22] : memref<1x128xf32, #tpu.memory_space<vmem>>, vector<1x128xf32>
      %c0_23 = arith.constant 0 : index
      %c0_24 = arith.constant 0 : index
      %34 = vector.load %arg15[%c0_23, %c0_24] : memref<1x128xf32, #tpu.memory_space<vmem>>, vector<1x128xf32>
      %35 = math.log %34 : vector<1x128xf32>
      %36 = arith.addf %33, %35 : vector<1x128xf32>
      %37 = vector.shape_cast %36 : vector<1x128xf32> to vector<1x1x128xf32>
      %c0_25 = arith.constant 0 : index
      %c0_26 = arith.constant 0 : index
      %c0_27 = arith.constant 0 : index
      %38 = vector.load %arg11[%c0_25, %c0_26, %c0_27] : memref<1x1x128xf32, #tpu.memory_space<vmem>>, vector<1x1x128xf32>
      tpu.vector_store %arg11[%c0_25, %c0_26, %c0_27], %37 {strides = array<i32>} : memref<1x1x128xf32, #tpu.memory_space<vmem>>, vector<1x1x128xf32>,
    } else {
    }
    return
  }
  func.func @transform_0(%arg0: i32, %arg1: i32) -> (i32, i32, i32) {
    %c0_i32 = arith.constant 0 : i32
    %c0_i32_0 = arith.constant 0 : i32
    %c0_i32_1 = arith.constant 0 : i32
    return %arg0, %c0_i32, %c0_i32_0 : i32, i32, i32
  }
  func.func @transform_1(%arg0: i32, %arg1: i32) -> (i32, i32) {
    %c0_i32 = arith.constant 0 : i32
    %c0_i32_0 = arith.constant 0 : i32
    %c0_i32_1 = arith.constant 0 : i32
    return %c0_i32, %c0_i32_0 : i32, i32
  }
  func.func @transform_2(%arg0: i32, %arg1: i32) -> (i32, i32) {
    %c0_i32 = arith.constant 0 : i32
    %c0_i32_0 = arith.constant 0 : i32
    %c0_i32_1 = arith.constant 0 : i32
    return %c0_i32, %c0_i32_0 : i32, i32
  }
  func.func @transform_3(%arg0: i32, %arg1: i32) -> (i32, i32) {
    %c0_i32 = arith.constant 0 : i32
    %c0_i32_0 = arith.constant 0 : i32
    %c0_i32_1 = arith.constant 0 : i32
    return %c0_i32, %c0_i32_0 : i32, i32
  }
  func.func @transform_4(%arg0: i32, %arg1: i32) -> (i32, i32) {
    %c0_i32 = arith.constant 0 : i32
    %c0_i32_0 = arith.constant 0 : i32
    %c0_i32_1 = arith.constant 0 : i32
    return %c0_i32, %c0_i32_0 : i32, i32
  }
  func.func @transform_5(%arg0: i32, %arg1: i32) -> (i32, i32) {
    %c0_i32 = arith.constant 0 : i32
    %c0_i32_0 = arith.constant 0 : i32
    %c0_i32_1 = arith.constant 0 : i32
    return %c0_i32, %c0_i32_0 : i32, i32
  }
  func.func @transform_6(%arg0: i32, %arg1: i32) -> (i32, i32) {
    %c0_i32 = arith.constant 0 : i32
    %c0_i32_0 = arith.constant 0 : i32
    return %c0_i32, %arg1 : i32, i32
  }
  func.func @transform_7(%arg0: i32, %arg1: i32) -> (i32, i32) {
    %c0_i32 = arith.constant 0 : i32
    %c0_i32_0 = arith.constant 0 : i32
    return %c0_i32, %arg1 : i32, i32
  }
  func.func @transform_8(%arg0: i32, %arg1: i32) -> (i32, i32, i32) {
    %c0_i32 = arith.constant 0 : i32
    %c0_i32_0 = arith.constant 0 : i32
    return %arg0, %c0_i32, %arg1 : i32, i32, i32
  }
  func.func @transform_9(%arg0: i32, %arg1: i32) -> (i32, i32, i32) {
    %c0_i32 = arith.constant 0 : i32
    %c0_i32_0 = arith.constant 0 : i32
    %c0_i32_1 = arith.constant 0 : i32
    return %arg0, %c0_i32, %c0_i32_0 : i32, i32, i32
  }
  func.func @transform_10(%arg0: i32, %arg1: i32) -> (i32, i32) {
    %c0_i32 = arith.constant 0 : i32
    %c0_i32_0 = arith.constant 0 : i32
    %c0_i32_1 = arith.constant 0 : i32
    return %c0_i32, %c0_i32_0 : i32, i32
  }
}

</mosaic_0001>

<llo_original>
// kernel: general_decoder_rnn_forward.1
$region0: #{general_decoder_rnn_forward.1}
  #allocation0 [shape = 'u32[]', space=smem, size = 0x4, offset = 0x4, fixed_abs, tag = 'smem constant byte address 0x4 - core index']
  #allocation1 [shape = 'u32[144,128]{1,0:T(1,128)}', space=vmem, size = 0x12000, scoped, tag = 'internal scratch']
  #allocation2 [shape = 'f32[1,128]{1,0:T(1,128)}', space=vmem, size = 0x200, scoped, tag = 'scratch operand']
  #allocation3 [shape = 'f32[1,128]{1,0:T(1,128)}', space=vmem, size = 0x200, scoped, tag = 'scratch operand']
  #allocation4 [shape = 'f32[1,128]{1,0:T(1,128)}', space=vmem, size = 0x200, scoped, tag = 'scratch operand']
  %s0 = inlined_call_operand.vmem [shape: f32[1,1,16], index: 0, kind: input, shape index: {}]
  %s1 = inlined_call_operand.vmem [shape: f32[1,128], index: 1, kind: input, shape index: {}, may-alias: {1,10}]
  %s2 = inlined_call_operand.vmem [shape: bf16[16,384], index: 2, kind: input, shape index: {}]
  %s3 = inlined_call_operand.hbm [shape: bf16[128,384], index: 3, kind: input, shape index: {}]
  %s4 = inlined_call_operand.vmem [shape: f32[1,384], index: 4, kind: input, shape index: {}]
  %s5 = inlined_call_operand.vmem [shape: f32[1,128], index: 5, kind: input, shape index: {}]
  %s6 = inlined_call_operand.hbm [shape: bf16[128,128], index: 6, kind: input, shape index: {}]
  %s7 = inlined_call_operand.vmem [shape: f32[1,128], index: 7, kind: input, shape index: {}]
  %s8 = inlined_call_operand.vmem [shape: f32[1,1,128], index: 8, kind: output, shape index: {0}]
  %s9 = inlined_call_operand.vmem [shape: f32[1,1,128], index: 9, kind: output, shape index: {1}]
  %s10 = inlined_call_operand.vmem [shape: f32[1,128], index: 10, kind: output, shape index: {2}, may-alias: {1,10}]
  %11 = xla_tuple %s8, %s9, %s10
  %s12 = sld [smem:[#allocation0]]
  $region78: #{general_decoder_rnn_forward.1} parent=0
    _
  %s14 = ssub.s32 1, %s12
  %s15 = scalar_select 0, %s14, %s12
  $region1: #{general_decoder_rnn_forward.1} parent=0
    #allocation5 [shape = 'u8[98304]{0}', space=vmem, size = 0x18000, scoped, tag = 'input window, operand 3, single buffered']
    #allocation6 [shape = 's32[1]{0}', space=sflag, size = 0x4, scoped, tag = 'scoped memory for general_decoder_rnn_forward.1']
    #allocation7 [shape = 'u8[32768]{0}', space=vmem, size = 0x8000, scoped, tag = 'input window, operand 6, single buffered']
    #allocation8 [shape = 's32[1]{0}', space=sflag, size = 0x4, scoped, tag = 'scoped memory for general_decoder_rnn_forward.1']
    %16 = vsyncpa [#allocation6], 0
    %17 = vsyncpa [#allocation8], 0
    // Predicated region
    $region2: #{general_decoder_rnn_forward.1} parent=1 // pred_check
      _
    $region3: #{general_decoder_rnn_forward.1} parent=1 // pred_check_branch
      %19 = sbr.rel (0) target = $region5
    $region4: #{general_decoder_rnn_forward.1} parent=1 // pred_region
      _
    $region5: #{general_decoder_rnn_forward.1} parent=1 // pred_fallthru
      _
    // Predicated region
    $region6: #{general_decoder_rnn_forward.1} parent=1 // pred_check
      _
    $region7: #{general_decoder_rnn_forward.1} parent=1 // pred_check_branch
      %21 = sbr.rel (0) target = $region9
    $region8: #{general_decoder_rnn_forward.1} parent=1 // pred_region
      _
    $region9: #{general_decoder_rnn_forward.1} parent=1 // pred_fallthru
      _
    // Predicated region
    $region10: #{general_decoder_rnn_forward.1} parent=1 // pred_check
      _
    $region11: #{general_decoder_rnn_forward.1} parent=1 // pred_check_branch
      %23 = sbr.rel (0) target = $region13
    $region12: #{general_decoder_rnn_forward.1} parent=1 // pred_region
      _
    $region13: #{general_decoder_rnn_forward.1} parent=1 // pred_fallthru
      _
    // Predicated region
    $region14: #{general_decoder_rnn_forward.1} parent=1 // pred_check
      _
    $region15: #{general_decoder_rnn_forward.1} parent=1 // pred_check_branch
      %25 = sbr.rel (0) target = $region17
    $region16: #{general_decoder_rnn_forward.1} parent=1 // pred_region
      %s27 = ssub.s32 3072, 3072
      %28 = vsyncadd [#allocation6], %s27
      %s29 = sshll.u32 [#allocation5], 4
      %s30 = int_to_ptr.vmem [resolvable:$true] %s29
      %35 = dma.hbm_to_vmem [thread:$0]  %s3, 3072, %s30, [#allocation6], 192, 192, 12
    $region17: #{general_decoder_rnn_forward.1} parent=1 // pred_fallthru
      _
    // Predicated region
    $region18: #{general_decoder_rnn_forward.1} parent=1 // pred_check
      _
    $region19: #{general_decoder_rnn_forward.1} parent=1 // pred_check_branch
      %37 = sbr.rel (0) target = $region21
    $region20: #{general_decoder_rnn_forward.1} parent=1 // pred_region
      _
    $region21: #{general_decoder_rnn_forward.1} parent=1 // pred_fallthru
      _
    // Predicated region
    $region22: #{general_decoder_rnn_forward.1} parent=1 // pred_check
      _
    $region23: #{general_decoder_rnn_forward.1} parent=1 // pred_check_branch
      %39 = sbr.rel (0) target = $region25
    $region24: #{general_decoder_rnn_forward.1} parent=1 // pred_region
      _
    $region25: #{general_decoder_rnn_forward.1} parent=1 // pred_fallthru
      _
    // Predicated region
    $region26: #{general_decoder_rnn_forward.1} parent=1 // pred_check
      _
    $region27: #{general_decoder_rnn_forward.1} parent=1 // pred_check_branch
      %41 = sbr.rel (0) target = $region29
    $region28: #{general_decoder_rnn_forward.1} parent=1 // pred_region
      %s43 = ssub.s32 1024, 1024
      %44 = vsyncadd [#allocation8], %s43
      %s45 = sshll.u32 [#allocation7], 4
      %s46 = int_to_ptr.vmem [resolvable:$true] %s45
      %51 = dma.hbm_to_vmem [thread:$0]  %s6, 1024, %s46, [#allocation8], 64, 64, 4
    $region29: #{general_decoder_rnn_forward.1} parent=1 // pred_fallthru
      _
    // Predicated region
    $region30: #{general_decoder_rnn_forward.1} parent=1 // pred_check
      _
    $region31: #{general_decoder_rnn_forward.1} parent=1 // pred_check_branch
      %53 = sbr.rel (0) target = $region33
    $region32: #{general_decoder_rnn_forward.1} parent=1 // pred_region
      _
    $region33: #{general_decoder_rnn_forward.1} parent=1 // pred_fallthru
      _
    // Predicated region
    $region34: #{general_decoder_rnn_forward.1} parent=1 // pred_check
      _
    $region35: #{general_decoder_rnn_forward.1} parent=1 // pred_check_branch
      %55 = sbr.rel (0) target = $region37
    $region36: #{general_decoder_rnn_forward.1} parent=1 // pred_region
      %56 = dma.done [#allocation6], 3072
    $region37: #{general_decoder_rnn_forward.1} parent=1 // pred_fallthru
      _
    // Predicated region
    $region38: #{general_decoder_rnn_forward.1} parent=1 // pred_check
      _
    $region39: #{general_decoder_rnn_forward.1} parent=1 // pred_check_branch
      %58 = sbr.rel (0) target = $region41
    $region40: #{general_decoder_rnn_forward.1} parent=1 // pred_region
      %59 = dma.done [#allocation8], 1024
    $region41: #{general_decoder_rnn_forward.1} parent=1 // pred_fallthru
      _
    %p61 = scmp.eq.s32.totalorder 0, 0
    // Predicated region
    $region42: #{general_decoder_rnn_forward.1} parent=1 // pred_check
      %p62 = pneg %p61
    $region43: #{general_decoder_rnn_forward.1} parent=1 // pred_check_branch
      %64 = sbr.rel (%p62) target = $region45
    $region44: #{general_decoder_rnn_forward.1} parent=1 // pred_region
      %p65 = scmp.eq.s32.totalorder 0, 0
      // Predicated region
      $region46: #{general_decoder_rnn_forward.1} parent=44 // pred_check
        %p66 = pneg %p65
      $region47: #{general_decoder_rnn_forward.1} parent=44 // pred_check_branch
        %68 = sbr.rel (%p66) target = $region49
      $region48: #{general_decoder_rnn_forward.1} parent=44 // pred_region
        %v69 = vld [vmem:[%s1] sm:$0x1]
        %70 = vst [vmem:[#allocation2] sm:$0x1] %v69
      $region49: #{general_decoder_rnn_forward.1} parent=44 // pred_fallthru
        _
      %v71 = vld [vmem:[%s0] sm:$0x1]
      %v72 = vld [vmem:[#allocation2] sm:$0x1]
      %v73 = vpack.c.bf16 %v71, %v71
      %v74 = vld [vmem:[%s2] sm:$0xff]
      %v75 = vld [vmem:[%s2 + $0x8] sm:$0xf]
      %v76 = vld [vmem:[%s2 + $0xc] sm:$0xff]
      %v77 = vld [vmem:[%s2 + $0x14] sm:$0xf]
      %v78 = vld [vmem:[%s4] sm:$0x7]
      %v83 = vunpack.c.l.b16 %v74
      %v84 = vunpack.c.h.b16 %v74
      %v85 = vunpack.c.l.b16 %v75
      %v86 = vunpack.c.l.b16 %v76
      %v87 = vunpack.c.h.b16 %v76
      %v88 = vunpack.c.l.b16 %v77
      %v89 = vpack.c.b16 %v86, %v83
      %v90 = vpack.c.b16 %v87, %v84
      %v91 = vpack.c.b16 %v88, %v85
      %v96 = vlaneseq
      %v97 = vshrl.u32 %v96, 7
      %v98 = vsub.s32 0, %v97
      %v99 = vrot.slane %v78, %v98
      %v100 = vlaneseq
      %v101 = vshrl.u32 %v100, 7
      %v102 = vsub.s32 1, %v101
      %v103 = vrot.slane %v78, %v102
      %v104 = vlaneseq
      %v105 = vshrl.u32 %v104, 7
      %v106 = vsub.s32 2, %v105
      %v107 = vrot.slane %v78, %v106
      %vm111 = vcmask 130048
      %v113 = vsel %vm111, %v73, 0
      %115 = vmatprep.subr.bf16.mxu0 %v90
      %116 = vmatpush1.bf16.msra.mxu0 %v89
      %117 = vmatprep.subr.bf16.mxu0 0
      %118 = vmatpush1.bf16.msra.mxu0 0
      %119 = vmatprep.subr.bf16.mxu0 0
      %120 = vmatpush1.bf16.msra.mxu0 0
      %121 = vmatprep.subr.bf16.mxu0 0
      %122 = vmatpush1.bf16.msra.mxu0 0
      %123 = vmatprep.subr.bf16.mxu0 0
      %124 = vmatpush1.bf16.msra.mxu0 0
      %125 = vmatprep.subr.bf16.mxu0 0
      %126 = vmatpush1.bf16.msra.mxu0 0
      %127 = vmatprep.subr.bf16.mxu0 0
      %128 = vmatpush1.bf16.msra.mxu0 0
      %129 = vmatprep.subr.bf16.mxu0 0
      %130 = vmatpush1.bf16.msra.mxu0 0
      %131 = vmatprep.subr.bf16.mxu0 0
      %132 = vmatpush1.bf16.msra.mxu0 0
      %133 = vmatprep.subr.bf16.mxu0 0
      %134 = vmatpush1.bf16.msra.mxu0 0
      %135 = vmatprep.subr.bf16.mxu0 0
      %136 = vmatpush1.bf16.msra.mxu0 0
      %137 = vmatprep.subr.bf16.mxu0 0
      %138 = vmatpush1.bf16.msra.mxu0 0
      %139 = vmatprep.subr.bf16.mxu0 0
      %140 = vmatpush1.bf16.msra.mxu0 0
      %141 = vmatprep.subr.bf16.mxu0 0
      %142 = vmatpush1.bf16.msra.mxu0 0
      %143 = vmatprep.subr.bf16.mxu0 0
      %144 = vmatpush1.bf16.msra.mxu0 0
      %145 = vmatprep.subr.bf16.mxu0 0
      %146 = vmatpush1.bf16.msra.mxu0 0
      %147 = vmatprep.mubr.bf16.mxu0 0
      %148 = vmatmul.mubr.bf16.gmra.mrb[0].mxu0 %v113
      %v149 = vpop.f32.mrb[0].mxu0
      %v150 = vadd.f32 %v99, %v149
      %v151 = vpop.f32.mrb[0].mxu0
      %v152 = vadd.f32 %v103, %v151
      %v153 = vpop.f32.mrb[0].mxu0
      %v154 = vpop.f32.mrb[0].mxu0
      %155 = vdwg.mxu0
      %156 = vmatprep.subr.bf16.mxu0 0
      %157 = vmatpush1.bf16.msra.mxu0 %v91
      %158 = vmatprep.subr.bf16.mxu0 0
      %159 = vmatpush1.bf16.msra.mxu0 0
      %160 = vmatprep.subr.bf16.mxu0 0
      %161 = vmatpush1.bf16.msra.mxu0 0
      %162 = vmatprep.subr.bf16.mxu0 0
      %163 = vmatpush1.bf16.msra.mxu0 0
      %164 = vmatprep.subr.bf16.mxu0 0
      %165 = vmatpush1.bf16.msra.mxu0 0
      %166 = vmatprep.subr.bf16.mxu0 0
      %167 = vmatpush1.bf16.msra.mxu0 0
      %168 = vmatprep.subr.bf16.mxu0 0
      %169 = vmatpush1.bf16.msra.mxu0 0
      %170 = vmatprep.subr.bf16.mxu0 0
      %171 = vmatpush1.bf16.msra.mxu0 0
      %172 = vmatprep.subr.bf16.mxu0 0
      %173 = vmatpush1.bf16.msra.mxu0 0
      %174 = vmatprep.subr.bf16.mxu0 0
      %175 = vmatpush1.bf16.msra.mxu0 0
      %176 = vmatprep.subr.bf16.mxu0 0
      %177 = vmatpush1.bf16.msra.mxu0 0
      %178 = vmatprep.subr.bf16.mxu0 0
      %179 = vmatpush1.bf16.msra.mxu0 0
      %180 = vmatprep.subr.bf16.mxu0 0
      %181 = vmatpush1.bf16.msra.mxu0 0
      %182 = vmatprep.subr.bf16.mxu0 0
      %183 = vmatpush1.bf16.msra.mxu0 0
      %184 = vmatprep.subr.bf16.mxu0 0
      %185 = vmatpush1.bf16.msra.mxu0 0
      %186 = vmatprep.subr.bf16.mxu0 0
      %187 = vmatpush1.bf16.msra.mxu0 0
      %188 = vmatprep.mubr.bf16.mxu0 0
      %189 = vmatmul.mubr.bf16.gmra.mrb[0].mxu0 %v113
      %v190 = vpop.f32.mrb[0].mxu0
      %v191 = vadd.f32 %v107, %v190
      %v192 = vpop.f32.mrb[0].mxu0
      %v193 = vpop.f32.mrb[0].mxu0
      %v194 = vpop.f32.mrb[0].mxu0
      %195 = vdwg.mxu0
      %v196 = vpack.c.bf16 %v72, %v72
      %v197 = vld [vmem:[#allocation5] sm:$0xff]
      %v198 = vld [vmem:[#allocation5 + $0x8] sm:$0xf]
      %v199 = vld [vmem:[#allocation5 + $0xc] sm:$0xff]
      %v200 = vld [vmem:[#allocation5 + $0x14] sm:$0xf]
      %v201 = vld [vmem:[#allocation5 + $0x18] sm:$0xff]
      %v202 = vld [vmem:[#allocation5 + $0x20] sm:$0xf]
      %v203 = vld [vmem:[#allocation5 + $0x24] sm:$0xff]
      %v204 = vld [vmem:[#allocation5 + $0x2c] sm:$0xf]
      %v205 = vld [vmem:[#allocation5 + $0x30] sm:$0xff]
      %v206 = vld [vmem:[#allocation5 + $0x38] sm:$0xf]
      %v207 = vld [vmem:[#allocation5 + $0x3c] sm:$0xff]
      %v208 = vld [vmem:[#allocation5 + $0x44] sm:$0xf]
      %v209 = vld [vmem:[#allocation5 + $0x48] sm:$0xff]
      %v210 = vld [vmem:[#allocation5 + $0x50] sm:$0xf]
      %v211 = vld [vmem:[#allocation5 + $0x54] sm:$0xff]
      %v212 = vld [vmem:[#allocation5 + $0x5c] sm:$0xf]
      %v213 = vld [vmem:[#allocation5 + $0x60] sm:$0xff]
      %v214 = vld [vmem:[#allocation5 + $0x68] sm:$0xf]
      %v215 = vld [vmem:[#allocation5 + $0x6c] sm:$0xff]
      %v216 = vld [vmem:[#allocation5 + $0x74] sm:$0xf]
      %v217 = vld [vmem:[#allocation5 + $0x78] sm:$0xff]
      %v218 = vld [vmem:[#allocation5 + $0x80] sm:$0xf]
      %v219 = vld [vmem:[#allocation5 + $0x84] sm:$0xff]
      %v220 = vld [vmem:[#allocation5 + $0x8c] sm:$0xf]
      %v221 = vld [vmem:[#allocation5 + $0x90] sm:$0xff]
      %v222 = vld [vmem:[#allocation5 + $0x98] sm:$0xf]
      %v223 = vld [vmem:[#allocation5 + $0x9c] sm:$0xff]
      %v224 = vld [vmem:[#allocation5 + $0xa4] sm:$0xf]
      %v225 = vld [vmem:[#allocation5 + $0xa8] sm:$0xff]
      %v226 = vld [vmem:[#allocation5 + $0xb0] sm:$0xf]
      %v227 = vld [vmem:[#allocation5 + $0xb4] sm:$0xff]
      %v228 = vld [vmem:[#allocation5 + $0xbc] sm:$0xf]
      %v261 = vunpack.c.l.b16 %v197
      %v262 = vunpack.c.h.b16 %v197
      %v263 = vunpack.c.l.b16 %v198
      %v264 = vunpack.c.l.b16 %v199
      %v265 = vunpack.c.h.b16 %v199
      %v266 = vunpack.c.l.b16 %v200
      %v267 = vunpack.c.l.b16 %v201
      %v268 = vunpack.c.h.b16 %v201
      %v269 = vunpack.c.l.b16 %v202
      %v270 = vunpack.c.l.b16 %v203
      %v271 = vunpack.c.h.b16 %v203
      %v272 = vunpack.c.l.b16 %v204
      %v273 = vunpack.c.l.b16 %v205
      %v274 = vunpack.c.h.b16 %v205
      %v275 = vunpack.c.l.b16 %v206
      %v276 = vunpack.c.l.b16 %v207
      %v277 = vunpack.c.h.b16 %v207
      %v278 = vunpack.c.l.b16 %v208
      %v279 = vunpack.c.l.b16 %v209
      %v280 = vunpack.c.h.b16 %v209
      %v281 = vunpack.c.l.b16 %v210
      %v282 = vunpack.c.l.b16 %v211
      %v283 = vunpack.c.h.b16 %v211
      %v284 = vunpack.c.l.b16 %v212
      %v285 = vunpack.c.l.b16 %v213
      %v286 = vunpack.c.h.b16 %v213
      %v287 = vunpack.c.l.b16 %v214
      %v288 = vunpack.c.l.b16 %v215
      %v289 = vunpack.c.h.b16 %v215
      %v290 = vunpack.c.l.b16 %v216
      %v291 = vunpack.c.l.b16 %v217
      %v292 = vunpack.c.h.b16 %v217
      %v293 = vunpack.c.l.b16 %v218
      %v294 = vunpack.c.l.b16 %v219
      %v295 = vunpack.c.h.b16 %v219
      %v296 = vunpack.c.l.b16 %v220
      %v297 = vunpack.c.l.b16 %v221
      %v298 = vunpack.c.h.b16 %v221
      %v299 = vunpack.c.l.b16 %v222
      %v300 = vunpack.c.l.b16 %v223
      %v301 = vunpack.c.h.b16 %v223
      %v302 = vunpack.c.l.b16 %v224
      %v303 = vunpack.c.l.b16 %v225
      %v304 = vunpack.c.h.b16 %v225
      %v305 = vunpack.c.l.b16 %v226
      %v306 = vunpack.c.l.b16 %v227
      %v307 = vunpack.c.h.b16 %v227
      %v308 = vunpack.c.l.b16 %v228
      %v309 = vpack.c.b16 %v264, %v261
      %v310 = vpack.c.b16 %v265, %v262
      %v311 = vpack.c.b16 %v266, %v263
      %v312 = vpack.c.b16 %v270, %v267
      %v313 = vpack.c.b16 %v271, %v268
      %v314 = vpack.c.b16 %v272, %v269
      %v315 = vpack.c.b16 %v276, %v273
      %v316 = vpack.c.b16 %v277, %v274
      %v317 = vpack.c.b16 %v278, %v275
      %v318 = vpack.c.b16 %v282, %v279
      %v319 = vpack.c.b16 %v283, %v280
      %v320 = vpack.c.b16 %v284, %v281
      %v321 = vpack.c.b16 %v288, %v285
      %v322 = vpack.c.b16 %v289, %v286
      %v323 = vpack.c.b16 %v290, %v287
      %v324 = vpack.c.b16 %v294, %v291
      %v325 = vpack.c.b16 %v295, %v292
      %v326 = vpack.c.b16 %v296, %v293
      %v327 = vpack.c.b16 %v300, %v297
      %v328 = vpack.c.b16 %v301, %v298
      %v329 = vpack.c.b16 %v302, %v299
      %v330 = vpack.c.b16 %v306, %v303
      %v331 = vpack.c.b16 %v307, %v304
      %v332 = vpack.c.b16 %v308, %v305
      %357 = vmatprep.subr.bf16.mxu0 %v310
      %358 = vmatpush1.bf16.msra.mxu0 %v309
      %359 = vmatprep.subr.bf16.mxu0 %v313
      %360 = vmatpush1.bf16.msra.mxu0 %v312
      %361 = vmatprep.subr.bf16.mxu0 %v316
      %362 = vmatpush1.bf16.msra.mxu0 %v315
      %363 = vmatprep.subr.bf16.mxu0 %v319
      %364 = vmatpush1.bf16.msra.mxu0 %v318
      %365 = vmatprep.subr.bf16.mxu0 %v322
      %366 = vmatpush1.bf16.msra.mxu0 %v321
      %367 = vmatprep.subr.bf16.mxu0 %v325
      %368 = vmatpush1.bf16.msra.mxu0 %v324
      %369 = vmatprep.subr.bf16.mxu0 %v328
      %370 = vmatpush1.bf16.msra.mxu0 %v327
      %371 = vmatprep.subr.bf16.mxu0 %v331
      %372 = vmatpush1.bf16.msra.mxu0 %v330
      %373 = vmatprep.subr.bf16.mxu0 0
      %374 = vmatpush1.bf16.msra.mxu0 0
      %375 = vmatprep.subr.bf16.mxu0 0
      %376 = vmatpush1.bf16.msra.mxu0 0
      %377 = vmatprep.subr.bf16.mxu0 0
      %378 = vmatpush1.bf16.msra.mxu0 0
      %379 = vmatprep.subr.bf16.mxu0 0
      %380 = vmatpush1.bf16.msra.mxu0 0
      %381 = vmatprep.subr.bf16.mxu0 0
      %382 = vmatpush1.bf16.msra.mxu0 0
      %383 = vmatprep.subr.bf16.mxu0 0
      %384 = vmatpush1.bf16.msra.mxu0 0
      %385 = vmatprep.subr.bf16.mxu0 0
      %386 = vmatpush1.bf16.msra.mxu0 0
      %387 = vmatprep.subr.bf16.mxu0 0
      %388 = vmatpush1.bf16.msra.mxu0 0
      %389 = vmatprep.mubr.bf16.mxu0 0
      %390 = vmatmul.mubr.bf16.gmra.mrb[0].mxu0 %v196
      %v391 = vpop.f32.mrb[0].mxu0
      %v392 = vadd.f32 0.0, %v391
      %v393 = vpop.f32.mrb[0].mxu0
      %v394 = vadd.f32 0.0, %v393
      %v395 = vpop.f32.mrb[0].mxu0
      %v396 = vpop.f32.mrb[0].mxu0
      %397 = vdwg.mxu0
      %398 = vmatprep.subr.bf16.mxu0 0
      %399 = vmatpush1.bf16.msra.mxu0 %v311
      %400 = vmatprep.subr.bf16.mxu0 0
      %401 = vmatpush1.bf16.msra.mxu0 %v314
      %402 = vmatprep.subr.bf16.mxu0 0
      %403 = vmatpush1.bf16.msra.mxu0 %v317
      %404 = vmatprep.subr.bf16.mxu0 0
      %405 = vmatpush1.bf16.msra.mxu0 %v320
      %406 = vmatprep.subr.bf16.mxu0 0
      %407 = vmatpush1.bf16.msra.mxu0 %v323
      %408 = vmatprep.subr.bf16.mxu0 0
      %409 = vmatpush1.bf16.msra.mxu0 %v326
      %410 = vmatprep.subr.bf16.mxu0 0
      %411 = vmatpush1.bf16.msra.mxu0 %v329
      %412 = vmatprep.subr.bf16.mxu0 0
      %413 = vmatpush1.bf16.msra.mxu0 %v332
      %414 = vmatprep.subr.bf16.mxu0 0
      %415 = vmatpush1.bf16.msra.mxu0 0
      %416 = vmatprep.subr.bf16.mxu0 0
      %417 = vmatpush1.bf16.msra.mxu0 0
      %418 = vmatprep.subr.bf16.mxu0 0
      %419 = vmatpush1.bf16.msra.mxu0 0
      %420 = vmatprep.subr.bf16.mxu0 0
      %421 = vmatpush1.bf16.msra.mxu0 0
      %422 = vmatprep.subr.bf16.mxu0 0
      %423 = vmatpush1.bf16.msra.mxu0 0
      %424 = vmatprep.subr.bf16.mxu0 0
      %425 = vmatpush1.bf16.msra.mxu0 0
      %426 = vmatprep.subr.bf16.mxu0 0
      %427 = vmatpush1.bf16.msra.mxu0 0
      %428 = vmatprep.subr.bf16.mxu0 0
      %429 = vmatpush1.bf16.msra.mxu0 0
      %430 = vmatprep.mubr.bf16.mxu0 0
      %431 = vmatmul.mubr.bf16.gmra.mrb[0].mxu0 %v196
      %v432 = vpop.f32.mrb[0].mxu0
      %v433 = vadd.f32 0.0, %v432
      %v434 = vpop.f32.mrb[0].mxu0
      %v435 = vpop.f32.mrb[0].mxu0
      %v436 = vpop.f32.mrb[0].mxu0
      %437 = vdwg.mxu0
      %v438 = vadd.f32 %v150, %v392
      %v439 = vxor.u32 %v438, 2147483648
      %v440 = vmul.f32 %v439, 1.442695
      %v441 = vpow.pop %v440
      %v442 = vadd.f32 %v441, 1.0
      %v443 = vrcp.pop %v442
      %v444 = vmul.f32 1.0, %v443
      %v445 = vadd.f32 %v152, %v394
      %v446 = vxor.u32 %v445, 2147483648
      %v447 = vmul.f32 %v446, 1.442695
      %v448 = vpow.pop %v447
      %v449 = vadd.f32 %v448, 1.0
      %v450 = vrcp.pop %v449
      %v451 = vmul.f32 1.0, %v450
      %v452 = vld [vmem:[%s5] sm:$0x1]
      %v453 = vadd.f32 %v433, %v452
      %v454 = vmul.f32 %v444, %v453
      %v455 = vadd.f32 %v191, %v454
      %v456 = vtanh.pop %v455
      %v457 = vsub.f32 1.0, %v451
      %v458 = vmul.f32 %v457, %v456
      %v459 = vmul.f32 %v451, %v72
      %v460 = vadd.f32 %v458, %v459
      %461 = vst [vmem:[#allocation2] sm:$0x1] %v460
      %462 = vst [vmem:[%s10] sm:$0x1] %v460
      %463 = vst [vmem:[#allocation3] sm:$0x1] -inf
      %464 = vst [vmem:[#allocation4] sm:$0x1] 0.0
    $region45: #{general_decoder_rnn_forward.1} parent=1 // pred_fallthru
      _
    %v465 = vld [vmem:[#allocation2] sm:$0x1]
    %v466 = vpack.c.bf16 %v465, %v465
    %v467 = vld [vmem:[#allocation7] sm:$0xf]
    %v468 = vld [vmem:[#allocation7 + $0x4] sm:$0xf]
    %v469 = vld [vmem:[#allocation7 + $0x8] sm:$0xf]
    %v470 = vld [vmem:[#allocation7 + $0xc] sm:$0xf]
    %v471 = vld [vmem:[#allocation7 + $0x10] sm:$0xf]
    %v472 = vld [vmem:[#allocation7 + $0x14] sm:$0xf]
    %v473 = vld [vmem:[#allocation7 + $0x18] sm:$0xf]
    %v474 = vld [vmem:[#allocation7 + $0x1c] sm:$0xf]
    %v475 = vld [vmem:[#allocation7 + $0x20] sm:$0xf]
    %v476 = vld [vmem:[#allocation7 + $0x24] sm:$0xf]
    %v477 = vld [vmem:[#allocation7 + $0x28] sm:$0xf]
    %v478 = vld [vmem:[#allocation7 + $0x2c] sm:$0xf]
    %v479 = vld [vmem:[#allocation7 + $0x30] sm:$0xf]
    %v480 = vld [vmem:[#allocation7 + $0x34] sm:$0xf]
    %v481 = vld [vmem:[#allocation7 + $0x38] sm:$0xf]
    %v482 = vld [vmem:[#allocation7 + $0x3c] sm:$0xf]
    %v483 = vld [vmem:[%s7] sm:$0x1]
    %v500 = vunpack.c.l.b16 %v467
    %v501 = vunpack.c.l.b16 %v468
    %v502 = vunpack.c.l.b16 %v469
    %v503 = vunpack.c.l.b16 %v470
    %v504 = vunpack.c.l.b16 %v471
    %v505 = vunpack.c.l.b16 %v472
    %v506 = vunpack.c.l.b16 %v473
    %v507 = vunpack.c.l.b16 %v474
    %v508 = vunpack.c.l.b16 %v475
    %v509 = vunpack.c.l.b16 %v476
    %v510 = vunpack.c.l.b16 %v477
    %v511 = vunpack.c.l.b16 %v478
    %v512 = vunpack.c.l.b16 %v479
    %v513 = vunpack.c.l.b16 %v480
    %v514 = vunpack.c.l.b16 %v481
    %v515 = vunpack.c.l.b16 %v482
    %v516 = vpack.c.b16 %v501, %v500
    %v517 = vpack.c.b16 %v503, %v502
    %v518 = vpack.c.b16 %v505, %v504
    %v519 = vpack.c.b16 %v507, %v506
    %v520 = vpack.c.b16 %v509, %v508
    %v521 = vpack.c.b16 %v511, %v510
    %v522 = vpack.c.b16 %v513, %v512
    %v523 = vpack.c.b16 %v515, %v514
    %532 = vmatprep.subr.bf16.mxu0 0
    %533 = vmatpush1.bf16.msra.mxu0 %v516
    %534 = vmatprep.subr.bf16.mxu0 0
    %535 = vmatpush1.bf16.msra.mxu0 %v517
    %536 = vmatprep.subr.bf16.mxu0 0
    %537 = vmatpush1.bf16.msra.mxu0 %v518
    %538 = vmatprep.subr.bf16.mxu0 0
    %539 = vmatpush1.bf16.msra.mxu0 %v519
    %540 = vmatprep.subr.bf16.mxu0 0
    %541 = vmatpush1.bf16.msra.mxu0 %v520
    %542 = vmatprep.subr.bf16.mxu0 0
    %543 = vmatpush1.bf16.msra.mxu0 %v521
    %544 = vmatprep.subr.bf16.mxu0 0
    %545 = vmatpush1.bf16.msra.mxu0 %v522
    %546 = vmatprep.subr.bf16.mxu0 0
    %547 = vmatpush1.bf16.msra.mxu0 %v523
    %548 = vmatprep.subr.bf16.mxu0 0
    %549 = vmatpush1.bf16.msra.mxu0 0
    %550 = vmatprep.subr.bf16.mxu0 0
    %551 = vmatpush1.bf16.msra.mxu0 0
    %552 = vmatprep.subr.bf16.mxu0 0
    %553 = vmatpush1.bf16.msra.mxu0 0
    %554 = vmatprep.subr.bf16.mxu0 0
    %555 = vmatpush1.bf16.msra.mxu0 0
    %556 = vmatprep.subr.bf16.mxu0 0
    %557 = vmatpush1.bf16.msra.mxu0 0
    %558 = vmatprep.subr.bf16.mxu0 0
    %559 = vmatpush1.bf16.msra.mxu0 0
    %560 = vmatprep.subr.bf16.mxu0 0
    %561 = vmatpush1.bf16.msra.mxu0 0
    %562 = vmatprep.subr.bf16.mxu0 0
    %563 = vmatpush1.bf16.msra.mxu0 0
    %564 = vmatprep.mubr.bf16.mxu0 0
    %565 = vmatmul.mubr.bf16.gmra.mrb[0].mxu0 %v466
    %v566 = vpop.f32.mrb[0].mxu0
    %v567 = vadd.f32 %v483, %v566
    %v568 = vpop.f32.mrb[0].mxu0
    %v569 = vpop.f32.mrb[0].mxu0
    %v570 = vpop.f32.mrb[0].mxu0
    %571 = vdwg.mxu0
    %572 = vst [vmem:[%s8] sm:$0x1] %v567
    %v573 = vld [vmem:[#allocation3] sm:$0x1]
    %vm574 = vcmask 1040384
    %v575 = vsel %vm574, %v567, -inf
    %576 = vmax.xlane.f32.xlu0 %v575
    %v577 = vpop.xlane.xlu0 %576
    %v578 = vmax.f32 %v573, %v577
    %580 = vset.pattern.permute.xlu0 0
    %581 = vperm.xlu0 %580, %v578
    %v582 = vpop.permute.xlu0 %581
    %v584 = vlaneseq
    %v585 = vshrl.u32 %v584, 7
    %v586 = vsub.s32 0, %v585
    %v587 = vrot.slane %v582, %v586
    %v588 = vsub.f32 %v567, %v587
    %v589 = vmul.f32 %v588, 1.442695
    %v590 = vpow.pop %v589
    %v591 = vsel %vm574, %v590, 0.0
    %592 = vadd.xlane.f32.xlu0 %v591
    %v593 = vpop.xlane.xlu0 %592
    %v594 = vld [vmem:[#allocation4] sm:$0x1]
    %v595 = vsub.f32 %v573, %v578
    %v596 = vmul.f32 %v595, 1.442695
    %v597 = vpow.pop %v596
    %v598 = vmul.f32 %v594, %v597
    %v599 = vadd.f32 %v598, %v593
    %600 = vst [vmem:[#allocation4] sm:$0x1] %v599
    %601 = vst [vmem:[#allocation3] sm:$0x1] %v578
    // Predicated region
    $region50: #{general_decoder_rnn_forward.1} parent=1 // pred_check
      %p602 = pneg %p61
    $region51: #{general_decoder_rnn_forward.1} parent=1 // pred_check_branch
      %604 = sbr.rel (%p602) target = $region53
    $region52: #{general_decoder_rnn_forward.1} parent=1 // pred_region
      %v605 = vld [vmem:[#allocation3] sm:$0x1]
      %v606 = vld [vmem:[#allocation4] sm:$0x1]
      %v607 = vlog2.pop %v606
      %v608 = vmul.f32 %v607, 0.6931472
      %v609 = vadd.f32 %v605, %v608
      %610 = vst [vmem:[%s9] sm:$0x1] %v609
    $region53: #{general_decoder_rnn_forward.1} parent=1 // pred_fallthru
      _
    // Predicated region
    $region54: #{general_decoder_rnn_forward.1} parent=1 // pred_check
      _
    $region55: #{general_decoder_rnn_forward.1} parent=1 // pred_check_branch
      %612 = sbr.rel (0) target = $region57
    $region56: #{general_decoder_rnn_forward.1} parent=1 // pred_region
      _
    $region57: #{general_decoder_rnn_forward.1} parent=1 // pred_fallthru
      _
    // Predicated region
    $region58: #{general_decoder_rnn_forward.1} parent=1 // pred_check
      _
    $region59: #{general_decoder_rnn_forward.1} parent=1 // pred_check_branch
      %614 = sbr.rel (0) target = $region61
    $region60: #{general_decoder_rnn_forward.1} parent=1 // pred_region
      _
    $region61: #{general_decoder_rnn_forward.1} parent=1 // pred_fallthru
      _
    // Predicated region
    $region62: #{general_decoder_rnn_forward.1} parent=1 // pred_check
      _
    $region63: #{general_decoder_rnn_forward.1} parent=1 // pred_check_branch
      %616 = sbr.rel (0) target = $region65
    $region64: #{general_decoder_rnn_forward.1} parent=1 // pred_region
      _
    $region65: #{general_decoder_rnn_forward.1} parent=1 // pred_fallthru
      _
    // Predicated region
    $region66: #{general_decoder_rnn_forward.1} parent=1 // pred_check
      _
    $region67: #{general_decoder_rnn_forward.1} parent=1 // pred_check_branch
      %618 = sbr.rel (0) target = $region69
    $region68: #{general_decoder_rnn_forward.1} parent=1 // pred_region
      _
    $region69: #{general_decoder_rnn_forward.1} parent=1 // pred_fallthru
      _
    // Predicated region
    $region70: #{general_decoder_rnn_forward.1} parent=1 // pred_check
      _
    $region71: #{general_decoder_rnn_forward.1} parent=1 // pred_check_branch
      %620 = sbr.rel (0) target = $region73
    $region72: #{general_decoder_rnn_forward.1} parent=1 // pred_region
      _
    $region73: #{general_decoder_rnn_forward.1} parent=1 // pred_fallthru
      _
    // Predicated region
    $region74: #{general_decoder_rnn_forward.1} parent=1 // pred_check
      _
    $region75: #{general_decoder_rnn_forward.1} parent=1 // pred_check_branch
      %622 = sbr.rel (0) target = $region77
    $region76: #{general_decoder_rnn_forward.1} parent=1 // pred_region
      _
    $region77: #{general_decoder_rnn_forward.1} parent=1 // pred_fallthru
      _
    %623 = vsyncpa [#allocation6], 1
    %624 = vsyncpa [#allocation8], 1

</llo_original>
